<compile_context>
chip_gen: v5e
topology: v5e:2x2
jax: 0.10.0
libtpu: 0.0.40
codegen_flags: <defaults>
</compile_context>

<pallas_src>
import jax
import jax.numpy as jnp
from jax.experimental import pallas as pl
from jax.experimental.pallas import tpu as pltpu

PAD = 128        # padded feature width (lane dimension)
PAD_B = 8        # padded batch (f32 sublane height)
BIAS_ROW = 128   # sublane of the slab holding the bias for each layer
SLAB_ROWS = 136  # 128 weight rows + 8 rows (bias row + zero pad, sublane-aligned)

# Logical layer dims: (in, out) per layer, applied in order.
LAYER_DIMS = ((20, 64), (64, 32), (32, 16))
OUT_DIM = LAYER_DIMS[-1][1]


def nest_mlp_kernel(x_ref, wb_ref, o_ref):
    # x_ref : (8, 128) bf16 padded activations
    # wb_ref: (3, 136, 128) bf16; rows [0:128] = W_i (in x out, zero padded),
    #         row 128 = bias_i (zero in padded lanes), rows 129..135 = zero.
    # o_ref : (8, 128) f32 output tile (lane-dense full-tile store).
    x = x_ref[...]

    # Layer 1: Linear(20 -> 64) + ReLU   (single bf16 MXU pass, f32 accumulate)
    b1 = wb_ref[0, BIAS_ROW:BIAS_ROW + 1, :].astype(jnp.float32)
    h1 = jnp.dot(x, wb_ref[0, :PAD, :], preferred_element_type=jnp.float32)
    h1 = jnp.maximum(h1 + b1, 0.0)

    # Layer 2: Linear(64 -> 32) + ReLU
    b2 = wb_ref[1, BIAS_ROW:BIAS_ROW + 1, :].astype(jnp.float32)
    h2 = jnp.dot(h1.astype(jnp.bfloat16), wb_ref[1, :PAD, :],
                 preferred_element_type=jnp.float32)
    h2 = jnp.maximum(h2 + b2, 0.0)

    # Layer 3: Linear(32 -> 16), no activation
    b3 = wb_ref[2, BIAS_ROW:BIAS_ROW + 1, :].astype(jnp.float32)
    out = jnp.dot(h2.astype(jnp.bfloat16), wb_ref[2, :PAD, :],
                  preferred_element_type=jnp.float32) + b3

    o_ref[...] = out.astype(o_ref.dtype)


def pack_params(params):
    """Zero-pad weights and biases into one (3, 136, 128) bf16 slab.

    Rows 0..127 hold W_i (in x out layout), row 128 holds bias_i, rows
    129..135 are zero padding. Padded lanes (columns >= fan_out) are zero in
    both the weights and the bias row, which keeps padded lanes exactly zero
    through the ReLUs — no in-kernel masking needed.
    """
    w1, b1, w2, b2, w3, b3 = params
    slab = jnp.zeros((3, SLAB_ROWS, PAD), jnp.float32)
    for i, (w, b) in enumerate(((w1, b1), (w2, b2), (w3, b3))):
        fan_in, fan_out = LAYER_DIMS[i]
        slab = slab.at[i, :fan_in, :fan_out].set(w)
        slab = slab.at[i, BIAS_ROW, :fan_out].set(b.reshape(-1))
    return slab.astype(jnp.bfloat16)  # round once, at pack time


@jax.jit
def nest_mlp(x, wb_slab):
    batch, in_dim = x.shape
    # Pad input to the native (8, 128) tile and cast to bf16; padded lanes are
    # zero and stay zero through every zero-padded layer. The pad here and the
    # slice below fuse with the pallas_call under this jit.
    x_pad = (jnp.zeros((PAD_B, PAD), jnp.bfloat16)
             .at[:batch, :in_dim].set(x.astype(jnp.bfloat16)))
    out_pad = pl.pallas_call(
        nest_mlp_kernel,
        out_shape=jax.ShapeDtypeStruct((PAD_B, PAD), jnp.float32),
        in_specs=[
            pl.BlockSpec(memory_space=pltpu.MemorySpace.VMEM),  # x_pad
            pl.BlockSpec(memory_space=pltpu.MemorySpace.VMEM),  # wb_slab
        ],
        out_specs=pl.BlockSpec(memory_space=pltpu.MemorySpace.VMEM),
    )(x_pad, wb_slab)
    return out_pad[:batch, :OUT_DIM]


def init_linear(key, fan_in, fan_out):
    """PyTorch nn.Linear default init: U(-1/sqrt(fan_in), 1/sqrt(fan_in))."""
    kw, kb = jax.random.split(key)
    bound = 1.0 / jnp.sqrt(jnp.float32(fan_in))
    # Stored as [in, out] (transposed vs torch's [out, in]) for x @ W.
    w = jax.random.uniform(kw, (fan_in, fan_out), jnp.float32, -bound, bound)
    b = jax.random.uniform(kb, (1, fan_out), jnp.float32, -bound, bound)
    return w, b


if __name__ == "__main__":
    key = jax.random.PRNGKey(0)
    k_x, k1, k2, k3 = jax.random.split(key, 4)

    # Input consistent with the module: X = torch.rand(2, 20)
    x = jax.random.uniform(k_x, (2, 20), jnp.float32)

    w1, b1 = init_linear(k1, 20, 64)
    w2, b2 = init_linear(k2, 64, 32)
    w3, b3 = init_linear(k3, 32, 16)
    params = (w1, b1, w2, b2, w3, b3)

    # Pack once (would normally be done at model-load time).
    wb_slab = pack_params(params)

    out = nest_mlp(x, wb_slab)
    out = jax.block_until_ready(out)

    # Pure-JAX f32 reference; tolerance relaxed for bf16 weights/activations.
    h1 = jnp.maximum(x @ w1 + b1, 0.0)
    h2 = jnp.maximum(h1 @ w2 + b2, 0.0)
    ref = h2 @ w3 + b3
    assert out.shape == (2, 16)
    assert jnp.allclose(out, ref, atol=2e-2, rtol=2e-2)

    print("KERNEL_OK")
</pallas_src>

<mosaic_0001>
module attributes {stable_mosaic.version = 11 : i64} {
  func.func @nest_mlp_kernel(%arg0: memref<8x128xbf16, #tpu.memory_space<vmem>>, %arg1: memref<3x136x128xbf16, #tpu.memory_space<vmem>>, %arg2: memref<8x128xf32, #tpu.memory_space<vmem>>) attributes {dimension_semantics = [], scalar_prefetch = 0 : i64, scratch_operands = 0 : i64, tpu.core_type = #tpu.core_type<tc>} {
    %c0 = arith.constant 0 : index
    %c0_0 = arith.constant 0 : index
    %0 = vector.load %arg0[%c0, %c0_0] : memref<8x128xbf16, #tpu.memory_space<vmem>>, vector<8x128xbf16>
    %c0_1 = arith.constant 0 : index
    %c128 = arith.constant 128 : index
    %c0_2 = arith.constant 0 : index
    %1 = vector.load %arg1[%c0_1, %c128, %c0_2] : memref<3x136x128xbf16, #tpu.memory_space<vmem>>, vector<1x1x128xbf16>
    %2 = vector.shape_cast %1 : vector<1x1x128xbf16> to vector<1x128xbf16>
    %3 = arith.extf %2 : vector<1x128xbf16> to vector<1x128xf32>
    %c0_3 = arith.constant 0 : index
    %c0_4 = arith.constant 0 : index
    %c0_5 = arith.constant 0 : index
    %4 = vector.load %arg1[%c0_3, %c0_4, %c0_5] : memref<3x136x128xbf16, #tpu.memory_space<vmem>>, vector<1x128x128xbf16>
    %5 = vector.shape_cast %4 : vector<1x128x128xbf16> to vector<128x128xbf16>
    %cst = arith.constant dense<0.000000e+00> : vector<8x128xf32>
    %6 = tpu.matmul %0, %5, %cst {dimension_numbers = #tpu.dot_dimension_numbers<[1], [0], [0], [1], [0, 0, 1, 1], [], []>} : vector<8x128xbf16>, vector<128x128xbf16>, vector<8x128xf32> -> vector<8x128xf32>
    %7 = vector.broadcast %3 : vector<1x128xf32> to vector<8x128xf32>
    %8 = arith.addf %6, %7 : vector<8x128xf32>
    %cst_6 = arith.constant 0.000000e+00 : f32
    %9 = vector.broadcast %cst_6 : f32 to vector<8x128xf32>
    %10 = arith.maximumf %8, %9 : vector<8x128xf32>
    %c1 = arith.constant 1 : index
    %c128_7 = arith.constant 128 : index
    %c0_8 = arith.constant 0 : index
    %11 = vector.load %arg1[%c1, %c128_7, %c0_8] : memref<3x136x128xbf16, #tpu.memory_space<vmem>>, vector<1x1x128xbf16>
    %12 = vector.shape_cast %11 : vector<1x1x128xbf16> to vector<1x128xbf16>
    %13 = arith.extf %12 : vector<1x128xbf16> to vector<1x128xf32>
    %14 = arith.truncf %10 : vector<8x128xf32> to vector<8x128xbf16>
    %c1_9 = arith.constant 1 : index
    %c0_10 = arith.constant 0 : index
    %c0_11 = arith.constant 0 : index
    %15 = vector.load %arg1[%c1_9, %c0_10, %c0_11] : memref<3x136x128xbf16, #tpu.memory_space<vmem>>, vector<1x128x128xbf16>
    %16 = vector.shape_cast %15 : vector<1x128x128xbf16> to vector<128x128xbf16>
    %cst_12 = arith.constant dense<0.000000e+00> : vector<8x128xf32>
    %17 = tpu.matmul %14, %16, %cst_12 {dimension_numbers = #tpu.dot_dimension_numbers<[1], [0], [0], [1], [0, 0, 1, 1], [], []>} : vector<8x128xbf16>, vector<128x128xbf16>, vector<8x128xf32> -> vector<8x128xf32>
    %18 = vector.broadcast %13 : vector<1x128xf32> to vector<8x128xf32>
    %19 = arith.addf %17, %18 : vector<8x128xf32>
    %cst_13 = arith.constant 0.000000e+00 : f32
    %20 = vector.broadcast %cst_13 : f32 to vector<8x128xf32>
    %21 = arith.maximumf %19, %20 : vector<8x128xf32>
    %c2 = arith.constant 2 : index
    %c128_14 = arith.constant 128 : index
    %c0_15 = arith.constant 0 : index
    %22 = vector.load %arg1[%c2, %c128_14, %c0_15] : memref<3x136x128xbf16, #tpu.memory_space<vmem>>, vector<1x1x128xbf16>
    %23 = vector.shape_cast %22 : vector<1x1x128xbf16> to vector<1x128xbf16>
    %24 = arith.extf %23 : vector<1x128xbf16> to vector<1x128xf32>
    %25 = arith.truncf %21 : vector<8x128xf32> to vector<8x128xbf16>
    %c2_16 = arith.constant 2 : index
    %c0_17 = arith.constant 0 : index
    %c0_18 = arith.constant 0 : index
    %26 = vector.load %arg1[%c2_16, %c0_17, %c0_18] : memref<3x136x128xbf16, #tpu.memory_space<vmem>>, vector<1x128x128xbf16>
    %27 = vector.shape_cast %26 : vector<1x128x128xbf16> to vector<128x128xbf16>
    %cst_19 = arith.constant dense<0.000000e+00> : vector<8x128xf32>
    %28 = tpu.matmul %25, %27, %cst_19 {dimension_numbers = #tpu.dot_dimension_numbers<[1], [0], [0], [1], [0, 0, 1, 1], [], []>} : vector<8x128xbf16>, vector<128x128xbf16>, vector<8x128xf32> -> vector<8x128xf32>
    %29 = vector.broadcast %24 : vector<1x128xf32> to vector<8x128xf32>
    %30 = arith.addf %28, %29 : vector<8x128xf32>
    %c0_20 = arith.constant 0 : index
    %c0_21 = arith.constant 0 : index
    %31 = vector.load %arg2[%c0_20, %c0_21] : memref<8x128xf32, #tpu.memory_space<vmem>>, vector<8x128xf32>
    tpu.vector_store %arg2[%c0_20, %c0_21], %30 {strides = array<i32>} : memref<8x128xf32, #tpu.memory_space<vmem>>, vector<8x128xf32>,
    return
  }
}

</mosaic_0001>

<llo_original>
// kernel: nest_mlp.1
$region0: #{nest_mlp.1}
  #allocation0 [shape = 'u32[]', space=smem, size = 0x4, offset = 0x4, fixed_abs, tag = 'smem constant byte address 0x4 - core index']
  #allocation1 [shape = 'u32[72,128]{1,0:T(1,128)}', space=vmem, size = 0x9000, scoped, tag = 'internal scratch']
  %s0 = inlined_call_operand.vmem [shape: bf16[8,128], index: 0, kind: input, shape index: {}]
  %s1 = inlined_call_operand.hbm [shape: bf16[3,136,128], index: 1, kind: input, shape index: {}]
  %s2 = inlined_call_operand.vmem [shape: f32[8,128], index: 2, kind: output, shape index: {}]
  %s3 = sld [smem:[#allocation0]]
  $region22: #{nest_mlp.1} parent=0
    _
  %s5 = ssub.s32 1, %s3
  %s6 = scalar_select 0, %s5, %s3
  $region1: #{nest_mlp.1} parent=0
    #allocation2 [shape = 'u8[104448]{0}', space=vmem, size = 0x19800, scoped, tag = 'input window, operand 1, single buffered']
    #allocation3 [shape = 's32[1]{0}', space=sflag, size = 0x4, scoped, tag = 'scoped memory for nest_mlp.1']
    %7 = vsyncpa [#allocation3], 0
    // Predicated region
    $region2: #{nest_mlp.1} parent=1 // pred_check
      _
    $region3: #{nest_mlp.1} parent=1 // pred_check_branch
      %9 = sbr.rel (0) target = $region5
    $region4: #{nest_mlp.1} parent=1 // pred_region
      _
    $region5: #{nest_mlp.1} parent=1 // pred_fallthru
      _
    // Predicated region
    $region6: #{nest_mlp.1} parent=1 // pred_check
      _
    $region7: #{nest_mlp.1} parent=1 // pred_check_branch
      %11 = sbr.rel (0) target = $region9
    $region8: #{nest_mlp.1} parent=1 // pred_region
      %13 = vsyncadd [#allocation3], 0
      %s14 = sshll.u32 %s1, 4
      %s15 = int_to_ptr.hbm [resolvable:$true] %s14
      %s16 = sshll.u32 [#allocation2], 4
      %s17 = int_to_ptr.vmem [resolvable:$true] %s16
      %22 = dma.hbm_to_vmem [thread:$0]  %s15, 3264, %s17, [#allocation3], 64, 64, 4
    $region9: #{nest_mlp.1} parent=1 // pred_fallthru
      _
    // Predicated region
    $region10: #{nest_mlp.1} parent=1 // pred_check
      _
    $region11: #{nest_mlp.1} parent=1 // pred_check_branch
      %24 = sbr.rel (0) target = $region13
    $region12: #{nest_mlp.1} parent=1 // pred_region
      %26 = dma.done [#allocation3], 3264
    $region13: #{nest_mlp.1} parent=1 // pred_fallthru
      _
    %v27 = vld [vmem:[%s0] sm:$0xf]
    %v28 = vld [vmem:[#allocation2 + $0x40] sm:$0x1]
    %v29 = vunpack.c.l.bf16 %v28
    %v30 = vld [vmem:[#allocation2] sm:$0xf]
    %v31 = vld [vmem:[#allocation2 + $0x4] sm:$0xf]
    %v32 = vld [vmem:[#allocation2 + $0x8] sm:$0xf]
    %v33 = vld [vmem:[#allocation2 + $0xc] sm:$0xf]
    %v34 = vld [vmem:[#allocation2 + $0x10] sm:$0xf]
    %v35 = vld [vmem:[#allocation2 + $0x14] sm:$0xf]
    %v36 = vld [vmem:[#allocation2 + $0x18] sm:$0xf]
    %v37 = vld [vmem:[#allocation2 + $0x1c] sm:$0xf]
    %v38 = vld [vmem:[#allocation2 + $0x20] sm:$0xf]
    %v39 = vld [vmem:[#allocation2 + $0x24] sm:$0xf]
    %v40 = vld [vmem:[#allocation2 + $0x28] sm:$0xf]
    %v41 = vld [vmem:[#allocation2 + $0x2c] sm:$0xf]
    %v42 = vld [vmem:[#allocation2 + $0x30] sm:$0xf]
    %v43 = vld [vmem:[#allocation2 + $0x34] sm:$0xf]
    %v44 = vld [vmem:[#allocation2 + $0x38] sm:$0xf]
    %v45 = vld [vmem:[#allocation2 + $0x3c] sm:$0xf]
    %v46 = vperm.slane %v29, 0
    %v63 = vunpack.c.l.b16 %v30
    %v64 = vunpack.c.l.b16 %v31
    %v65 = vunpack.c.l.b16 %v32
    %v66 = vunpack.c.l.b16 %v33
    %v67 = vunpack.c.l.b16 %v34
    %v68 = vunpack.c.l.b16 %v35
    %v69 = vunpack.c.l.b16 %v36
    %v70 = vunpack.c.l.b16 %v37
    %v71 = vunpack.c.l.b16 %v38
    %v72 = vunpack.c.l.b16 %v39
    %v73 = vunpack.c.l.b16 %v40
    %v74 = vunpack.c.l.b16 %v41
    %v75 = vunpack.c.l.b16 %v42
    %v76 = vunpack.c.l.b16 %v43
    %v77 = vunpack.c.l.b16 %v44
    %v78 = vunpack.c.l.b16 %v45
    %v79 = vpack.c.b16 %v64, %v63
    %v80 = vpack.c.b16 %v66, %v65
    %v81 = vpack.c.b16 %v68, %v67
    %v82 = vpack.c.b16 %v70, %v69
    %v83 = vpack.c.b16 %v72, %v71
    %v84 = vpack.c.b16 %v74, %v73
    %v85 = vpack.c.b16 %v76, %v75
    %v86 = vpack.c.b16 %v78, %v77
    %95 = vmatpush.bf16.msra.mxu0 %v86
    %96 = vmatpush.bf16.msra.mxu0 %v85
    %97 = vmatpush.bf16.msra.mxu0 %v84
    %98 = vmatpush.bf16.msra.mxu0 %v83
    %99 = vmatpush.bf16.msra.mxu0 %v82
    %100 = vmatpush.bf16.msra.mxu0 %v81
    %101 = vmatpush.bf16.msra.mxu0 %v80
    %102 = vmatpush.bf16.msra.mxu0 %v79
    %103 = vmatmul.bf16.gmra.mxu0 %v27
    %v104 = vpop.f32.mrf.mxu0
    %v105 = vadd.f32 %v46, %v104
    %v106 = vpop.f32.mrf.mxu0
    %107 = vdwg.mxu0
    %v108 = vmax.f32 %v105, 0.0
    %s109 = scalar_lea.vmem [#allocation2], 68
    %v110 = vld [vmem:[%s109 + $0x40] sm:$0x1]
    %v111 = vunpack.c.l.bf16 %v110
    %v112 = vpack.c.bf16 %v108, %v108
    %v113 = vld [vmem:[%s109] sm:$0xf]
    %v114 = vld [vmem:[%s109 + $0x4] sm:$0xf]
    %v115 = vld [vmem:[%s109 + $0x8] sm:$0xf]
    %v116 = vld [vmem:[%s109 + $0xc] sm:$0xf]
    %v117 = vld [vmem:[%s109 + $0x10] sm:$0xf]
    %v118 = vld [vmem:[%s109 + $0x14] sm:$0xf]
    %v119 = vld [vmem:[%s109 + $0x18] sm:$0xf]
    %v120 = vld [vmem:[%s109 + $0x1c] sm:$0xf]
    %v121 = vld [vmem:[%s109 + $0x20] sm:$0xf]
    %v122 = vld [vmem:[%s109 + $0x24] sm:$0xf]
    %v123 = vld [vmem:[%s109 + $0x28] sm:$0xf]
    %v124 = vld [vmem:[%s109 + $0x2c] sm:$0xf]
    %v125 = vld [vmem:[%s109 + $0x30] sm:$0xf]
    %v126 = vld [vmem:[%s109 + $0x34] sm:$0xf]
    %v127 = vld [vmem:[%s109 + $0x38] sm:$0xf]
    %v128 = vld [vmem:[%s109 + $0x3c] sm:$0xf]
    %v129 = vperm.slane %v111, 0
    %v146 = vunpack.c.l.b16 %v113
    %v147 = vunpack.c.l.b16 %v114
    %v148 = vunpack.c.l.b16 %v115
    %v149 = vunpack.c.l.b16 %v116
    %v150 = vunpack.c.l.b16 %v117
    %v151 = vunpack.c.l.b16 %v118
    %v152 = vunpack.c.l.b16 %v119
    %v153 = vunpack.c.l.b16 %v120
    %v154 = vunpack.c.l.b16 %v121
    %v155 = vunpack.c.l.b16 %v122
    %v156 = vunpack.c.l.b16 %v123
    %v157 = vunpack.c.l.b16 %v124
    %v158 = vunpack.c.l.b16 %v125
    %v159 = vunpack.c.l.b16 %v126
    %v160 = vunpack.c.l.b16 %v127
    %v161 = vunpack.c.l.b16 %v128
    %v162 = vpack.c.b16 %v147, %v146
    %v163 = vpack.c.b16 %v149, %v148
    %v164 = vpack.c.b16 %v151, %v150
    %v165 = vpack.c.b16 %v153, %v152
    %v166 = vpack.c.b16 %v155, %v154
    %v167 = vpack.c.b16 %v157, %v156
    %v168 = vpack.c.b16 %v159, %v158
    %v169 = vpack.c.b16 %v161, %v160
    %178 = vmatpush.bf16.msra.mxu0 %v169
    %179 = vmatpush.bf16.msra.mxu0 %v168
    %180 = vmatpush.bf16.msra.mxu0 %v167
    %181 = vmatpush.bf16.msra.mxu0 %v166
    %182 = vmatpush.bf16.msra.mxu0 %v165
    %183 = vmatpush.bf16.msra.mxu0 %v164
    %184 = vmatpush.bf16.msra.mxu0 %v163
    %185 = vmatpush.bf16.msra.mxu0 %v162
    %186 = vmatmul.bf16.gmra.mxu0 %v112
    %v187 = vpop.f32.mrf.mxu0
    %v188 = vadd.f32 %v129, %v187
    %v189 = vpop.f32.mrf.mxu0
    %190 = vdwg.mxu0
    %v191 = vmax.f32 %v188, 0.0
    %s192 = scalar_lea.vmem [#allocation2], 136
    %v193 = vld [vmem:[%s192 + $0x40] sm:$0x1]
    %v194 = vunpack.c.l.bf16 %v193
    %v195 = vpack.c.bf16 %v191, %v191
    %v196 = vld [vmem:[%s192] sm:$0xf]
    %v197 = vld [vmem:[%s192 + $0x4] sm:$0xf]
    %v198 = vld [vmem:[%s192 + $0x8] sm:$0xf]
    %v199 = vld [vmem:[%s192 + $0xc] sm:$0xf]
    %v200 = vld [vmem:[%s192 + $0x10] sm:$0xf]
    %v201 = vld [vmem:[%s192 + $0x14] sm:$0xf]
    %v202 = vld [vmem:[%s192 + $0x18] sm:$0xf]
    %v203 = vld [vmem:[%s192 + $0x1c] sm:$0xf]
    %v204 = vld [vmem:[%s192 + $0x20] sm:$0xf]
    %v205 = vld [vmem:[%s192 + $0x24] sm:$0xf]
    %v206 = vld [vmem:[%s192 + $0x28] sm:$0xf]
    %v207 = vld [vmem:[%s192 + $0x2c] sm:$0xf]
    %v208 = vld [vmem:[%s192 + $0x30] sm:$0xf]
    %v209 = vld [vmem:[%s192 + $0x34] sm:$0xf]
    %v210 = vld [vmem:[%s192 + $0x38] sm:$0xf]
    %v211 = vld [vmem:[%s192 + $0x3c] sm:$0xf]
    %v212 = vperm.slane %v194, 0
    %v229 = vunpack.c.l.b16 %v196
    %v230 = vunpack.c.l.b16 %v197
    %v231 = vunpack.c.l.b16 %v198
    %v232 = vunpack.c.l.b16 %v199
    %v233 = vunpack.c.l.b16 %v200
    %v234 = vunpack.c.l.b16 %v201
    %v235 = vunpack.c.l.b16 %v202
    %v236 = vunpack.c.l.b16 %v203
    %v237 = vunpack.c.l.b16 %v204
    %v238 = vunpack.c.l.b16 %v205
    %v239 = vunpack.c.l.b16 %v206
    %v240 = vunpack.c.l.b16 %v207
    %v241 = vunpack.c.l.b16 %v208
    %v242 = vunpack.c.l.b16 %v209
    %v243 = vunpack.c.l.b16 %v210
    %v244 = vunpack.c.l.b16 %v211
    %v245 = vpack.c.b16 %v230, %v229
    %v246 = vpack.c.b16 %v232, %v231
    %v247 = vpack.c.b16 %v234, %v233
    %v248 = vpack.c.b16 %v236, %v235
    %v249 = vpack.c.b16 %v238, %v237
    %v250 = vpack.c.b16 %v240, %v239
    %v251 = vpack.c.b16 %v242, %v241
    %v252 = vpack.c.b16 %v244, %v243
    %261 = vmatpush.bf16.msra.mxu0 %v252
    %262 = vmatpush.bf16.msra.mxu0 %v251
    %263 = vmatpush.bf16.msra.mxu0 %v250
    %264 = vmatpush.bf16.msra.mxu0 %v249
    %265 = vmatpush.bf16.msra.mxu0 %v248
    %266 = vmatpush.bf16.msra.mxu0 %v247
    %267 = vmatpush.bf16.msra.mxu0 %v246
    %268 = vmatpush.bf16.msra.mxu0 %v245
    %269 = vmatmul.bf16.gmra.mxu0 %v195
    %v270 = vpop.f32.mrf.mxu0
    %v271 = vadd.f32 %v212, %v270
    %v272 = vpop.f32.mrf.mxu0
    %273 = vdwg.mxu0
    %274 = vst [vmem:[%s2] sm:$0xff] %v271
    // Predicated region
    $region14: #{nest_mlp.1} parent=1 // pred_check
      _
    $region15: #{nest_mlp.1} parent=1 // pred_check_branch
      %276 = sbr.rel (0) target = $region17
    $region16: #{nest_mlp.1} parent=1 // pred_region
      _
    $region17: #{nest_mlp.1} parent=1 // pred_fallthru
      _
    // Predicated region
    $region18: #{nest_mlp.1} parent=1 // pred_check
      _
    $region19: #{nest_mlp.1} parent=1 // pred_check_branch
      %278 = sbr.rel (0) target = $region21
    $region20: #{nest_mlp.1} parent=1 // pred_region
      _
    $region21: #{nest_mlp.1} parent=1 // pred_fallthru
      _
    %279 = vsyncpa [#allocation3], 1

</llo_original>
